<compile_context>
chip_gen: v7x
topology: tpu7x:2x2x1
jax: 0.10.0
libtpu: 0.0.40
codegen_flags: <defaults>
</compile_context>

<pallas_src>
import functools

import jax
import jax.numpy as jnp
from jax import lax
from jax.experimental import pallas as pl
from jax.experimental.pallas import tpu as pltpu

_LANES = 128
_SUBLANES_F32 = 8
_CHUNK_TILES = 8          # tiles (vregs) processed per inner-loop iteration


def _cdiv(a, b):
    return -(-a // b)


def _round_up(a, b):
    return _cdiv(a, b) * b


def _tpu_defaults():
    """Returns (tiles_per_block, n_splits) tuned per chip generation.

    One 'tile' is one packed vreg of input (~4 KiB raw bytes regardless of
    dtype).  Budgets keep 2 inputs x 2 pipeline buffers inside each chip's
    default scoped-VMEM limit.  n_splits=2 only on 2-TensorCore parts (v7x);
    on single-TC chips the split would just be a phantom re-DMA + an extra
    accumulator row.
    """
    kind = ""
    try:
        kind = jax.devices()[0].device_kind.lower()
    except Exception:
        pass
    if ("v6" in kind) or ("v7" in kind) or ("tpu7" in kind):
        tiles_per_block = 1024          # 4 MiB/input/block
    else:
        tiles_per_block = 512           # 2 MiB/input/block (v5e 16 MiB scoped cap)
    n_splits = 2 if (("v7" in kind) or ("tpu7" in kind)) else 1
    return tiles_per_block, n_splits


def _sse_partial_kernel(x_ref, y_ref, out_ref, *, tiles_per_block, chunk_tiles,
                        blocks_per_split, n_blocks, n_tiles_arr, sublanes):
    """Accumulates a per-split (sublanes, 128) partial sum of squared errors."""
    p = pl.program_id(0)          # split index  ("parallel")
    j = pl.program_id(1)          # block index within this split (reduction axis)

    @pl.when(j == 0)
    def _():
        out_ref[...] = jnp.zeros_like(out_ref)

    # Global block id (unclamped).  int32 is plenty: overflow would need
    # > 2^31 tiles (~8 TB of f32 input).
    gid = p * blocks_per_split + j
    n_chunks = tiles_per_block // chunk_tiles
    acc0 = jnp.zeros((sublanes, _LANES), jnp.float32)

    def load_diff(c):
        start = pl.multiple_of(c * chunk_tiles, chunk_tiles)
        xd = x_ref[pl.ds(start, chunk_tiles), :, :].astype(jnp.float32)
        yd = y_ref[pl.ds(start, chunk_tiles), :, :].astype(jnp.float32)
        return start, xd - yd

    @pl.when(gid < n_blocks - 1)
    def _():
        # Hot path: every tile in this block is valid -> no iota/compare/select,
        # pure VPU sub/mul/add.  Chunked loop keeps live values to a handful of
        # vregs (no block-sized temporaries).
        def body(c, acc):
            _, d = load_diff(c)
            return acc + jnp.sum(d * d, axis=0)

        out_ref[...] += lax.fori_loop(0, n_chunks, body, acc0)

    @pl.when(gid >= n_blocks - 1)
    def _():
        # Cold path: the last real block (possibly ragged) and phantom split
        # blocks (index_map clamps them onto the last real block; valid == 0
        # masks everything they read, including uninitialized block padding).
        valid = jnp.clip(n_tiles_arr - gid * tiles_per_block, 0, tiles_per_block)

        def body(c, acc):
            start, d = load_diff(c)
            tile_idx = start + lax.broadcasted_iota(jnp.int32, d.shape, 0)
            sq = jnp.where(tile_idx < valid, d * d, 0.0)
            return acc + jnp.sum(sq, axis=0)

        out_ref[...] += lax.fori_loop(0, n_chunks, body, acc0)


def psnr_metric(toutputs, tlabels, *, data_range=255.0):
    """PSNR between two equal-shape tensors; SSE computed by a Pallas TPU kernel."""
    assert toutputs.shape == tlabels.shape
    n_elems = int(toutputs.size)
    assert n_elems > 0

    # Packed sublane layout per dtype width (f32 -> 8, bf16/f16 -> 16, 8-bit -> 32)
    # so a tile is always one packed vreg (~4 KiB raw) and DMA layout is optimal.
    itemsize = jnp.dtype(toutputs.dtype).itemsize
    sublanes = {4: 8, 2: 16, 1: 32}.get(itemsize, _SUBLANES_F32)
    tile_elems = sublanes * _LANES

    default_tiles, n_splits = _tpu_defaults()

    n_tiles_data = _cdiv(n_elems, tile_elems)
    if n_tiles_data >= default_tiles:
        # Large input: fixed block size; the ragged last block is handled by
        # the kernel's masked cold path (no full-array re-pad / HBM copy).
        tiles_per_block = default_tiles
        n_tiles_arr = n_tiles_data
    else:
        # Small input: one block that exactly covers the (chunk-aligned) array;
        # padding cost is negligible at this size.
        n_tiles_arr = _round_up(n_tiles_data, _CHUNK_TILES)
        tiles_per_block = n_tiles_arr

    padded_elems = n_tiles_arr * tile_elems

    x = jnp.ravel(toutputs)
    y = jnp.ravel(tlabels)
    if padded_elems != n_elems:
        # Zero padding contributes nothing to the SSE.
        x = jnp.pad(x, (0, padded_elems - n_elems))
        y = jnp.pad(y, (0, padded_elems - n_elems))

    x3 = x.reshape(n_tiles_arr, sublanes, _LANES)
    y3 = y.reshape(n_tiles_arr, sublanes, _LANES)

    n_blocks = _cdiv(n_tiles_arr, tiles_per_block)
    blocks_per_split = _cdiv(n_blocks, n_splits)

    kernel = functools.partial(
        _sse_partial_kernel,
        tiles_per_block=tiles_per_block,
        chunk_tiles=_CHUNK_TILES,
        blocks_per_split=blocks_per_split,
        n_blocks=n_blocks,
        n_tiles_arr=n_tiles_arr,
        sublanes=sublanes,
    )

    if n_splits == 1:
        def in_map(p, j):
            return (j, 0, 0)
    else:
        def in_map(p, j):
            # Clamp phantom (p, j) pairs onto the last real block; the kernel
            # masks their contribution to zero.
            return (jnp.minimum(p * blocks_per_split + j, n_blocks - 1), 0, 0)

    blk = (tiles_per_block, sublanes, _LANES)

    partials = pl.pallas_call(
        kernel,
        out_shape=jax.ShapeDtypeStruct((n_splits * sublanes, _LANES), jnp.float32),
        grid_spec=pltpu.PrefetchScalarGridSpec(
            num_scalar_prefetch=0,
            grid=(n_splits, blocks_per_split),
            in_specs=[
                pl.BlockSpec(blk, in_map),
                pl.BlockSpec(blk, in_map),
            ],
            out_specs=pl.BlockSpec((sublanes, _LANES), lambda p, j: (p, 0)),
        ),
        compiler_params=pltpu.CompilerParams(
            dimension_semantics=("parallel", "arbitrary"),
        ),
    )(x3, y3)

    # Tiny scalar epilogue (matches the PyTorch module's math exactly).
    sse = jnp.sum(partials)
    dr = jnp.float32(data_range)
    dr2 = dr * dr
    mse = (sse / jnp.float32(n_elems)) * dr2
    psnr = 10.0 * jnp.log10(dr2 / mse)   # mse == 0 -> +inf, same as the reference
    return psnr


def psnr_reference(toutputs, tlabels):
    data_range = 255.0
    mse = jnp.mean((toutputs - tlabels) ** 2) * data_range**2
    return 10.0 * jnp.log10(data_range**2 / mse)


if __name__ == "__main__":
    key = jax.random.PRNGKey(0)
    k1, k2, k3, k4 = jax.random.split(key, 4)

    # Small test (matches the module's typical NCHW usage): batch=2, ch=4, 16x16.
    toutputs = jax.random.uniform(k1, (2, 4, 16, 16), dtype=jnp.float32)
    tlabels = jax.random.uniform(k2, (2, 4, 16, 16), dtype=jnp.float32)
    psnr = jax.block_until_ready(psnr_metric(toutputs, tlabels))
    ref = jax.block_until_ready(psnr_reference(toutputs, tlabels))
    assert jnp.allclose(psnr, ref, rtol=1e-4, atol=1e-4), (psnr, ref)
    _ = float(psnr)   # .item() in the PyTorch module returns a python float

    # Larger check exercising the multi-block hot path + ragged last block
    # (412*2560 elems = 1030 vreg tiles, not a multiple of the block size).
    a = jax.random.uniform(k3, (412, 2560), dtype=jnp.float32)
    b = jax.random.uniform(k4, (412, 2560), dtype=jnp.float32)
    psnr2 = jax.block_until_ready(psnr_metric(a, b))
    ref2 = jax.block_until_ready(psnr_reference(a, b))
    assert jnp.allclose(psnr2, ref2, rtol=1e-4, atol=1e-3), (psnr2, ref2)

    print("KERNEL_OK")
</pallas_src>

<mosaic_0001>
module attributes {stable_mosaic.version = 11 : i64} {
  func.func @_sse_partial_kernel(%arg0: i32, %arg1: i32, %arg2: memref<8x8x128xf32, #tpu.memory_space<vmem>>, %arg3: memref<8x8x128xf32, #tpu.memory_space<vmem>>, %arg4: memref<8x128xf32, #tpu.memory_space<vmem>>) attributes {dimension_semantics = [#tpu.dimension_semantics<parallel>, #tpu.dimension_semantics<arbitrary>], iteration_bounds = array<i64: 1, 1>, scalar_prefetch = 0 : i64, scratch_operands = 0 : i64, tpu.core_type = #tpu.core_type<tc>, window_params = [{transform_indices = @transform_0, window_bounds = array<i64: 8, 8, 128>}, {transform_indices = @transform_1, window_bounds = array<i64: 8, 8, 128>}, {transform_indices = @transform_2, window_bounds = array<i64: 8, 128>}]} {
    %c0_i32 = arith.constant 0 : i32
    %0 = arith.cmpi eq, %arg1, %c0_i32 : i32
    %1 = arith.extui %0 : i1 to i32
    %c0_i32_0 = arith.constant 0 : i32
    %2 = arith.cmpi ne, %1, %c0_i32_0 : i32
    scf.if %2 {
      %cst_5 = arith.constant 0.000000e+00 : f32
      %12 = vector.broadcast %cst_5 : f32 to vector<8x128xf32>
      %c0 = arith.constant 0 : index
      %c0_6 = arith.constant 0 : index
      %13 = vector.load %arg4[%c0, %c0_6] : memref<8x128xf32, #tpu.memory_space<vmem>>, vector<8x128xf32>
      tpu.vector_store %arg4[%c0, %c0_6], %12 {strides = array<i32>} : memref<8x128xf32, #tpu.memory_space<vmem>>, vector<8x128xf32>,
    } else {
    }
    %c1_i32 = arith.constant 1 : i32
    %3 = arith.muli %arg0, %c1_i32 : i32
    %4 = arith.addi %3, %arg1 : i32
    %cst = arith.constant 0.000000e+00 : f32
    %5 = vector.broadcast %cst : f32 to vector<8x128xf32>
    %c0_i32_1 = arith.constant 0 : i32
    %6 = arith.cmpi slt, %4, %c0_i32_1 : i32
    %7 = arith.extui %6 : i1 to i32
    %c0_i32_2 = arith.constant 0 : i32
    %8 = arith.cmpi ne, %7, %c0_i32_2 : i32
    scf.if %8 {
      %c0 = arith.constant 0 : index
      %c0_5 = arith.constant 0 : index
      %12 = vector.load %arg4[%c0, %c0_5] : memref<8x128xf32, #tpu.memory_space<vmem>>, vector<8x128xf32>
      %c0_i32_6 = arith.constant 0 : i32
      %c8_i32 = arith.constant 8 : i32
      %13 = arith.muli %c0_i32_6, %c8_i32 : i32
      %14 = tpu.assume_multiple %13, 8 : i32
      %15 = arith.index_cast %14 : i32 to index
      %c0_7 = arith.constant 0 : index
      %c0_8 = arith.constant 0 : index
      %16 = vector.load %arg2[%15, %c0_7, %c0_8] : memref<8x8x128xf32, #tpu.memory_space<vmem>>, vector<8x8x128xf32>
      %17 = arith.index_cast %14 : i32 to index
      %c0_9 = arith.constant 0 : index
      %c0_10 = arith.constant 0 : index
      %18 = vector.load %arg3[%17, %c0_9, %c0_10] : memref<8x8x128xf32, #tpu.memory_space<vmem>>, vector<8x8x128xf32>
      %19 = arith.subf %16, %18 : vector<8x8x128xf32>
      %20 = arith.mulf %19, %19 : vector<8x8x128xf32>
      %cst_11 = arith.constant dense<0.000000e+00> : vector<8x128xf32>
      %21 = vector.multi_reduction <add>, %20, %cst_11 [0] : vector<8x8x128xf32> to vector<8x128xf32>
      %22 = arith.addf %5, %21 : vector<8x128xf32>
      %c1_i32_12 = arith.constant 1 : i32
      %23 = arith.addf %12, %22 : vector<8x128xf32>
      %c0_13 = arith.constant 0 : index
      %c0_14 = arith.constant 0 : index
      %24 = vector.load %arg4[%c0_13, %c0_14] : memref<8x128xf32, #tpu.memory_space<vmem>>, vector<8x128xf32>
      tpu.vector_store %arg4[%c0_13, %c0_14], %23 {strides = array<i32>} : memref<8x128xf32, #tpu.memory_space<vmem>>, vector<8x128xf32>,
    } else {
    }
    %c0_i32_3 = arith.constant 0 : i32
    %9 = arith.cmpi sge, %4, %c0_i32_3 : i32
    %10 = arith.extui %9 : i1 to i32
    %c0_i32_4 = arith.constant 0 : i32
    %11 = arith.cmpi ne, %10, %c0_i32_4 : i32
    scf.if %11 {
      %c8_i32 = arith.constant 8 : i32
      %12 = arith.muli %4, %c8_i32 : i32
      %c8_i32_5 = arith.constant 8 : i32
      %13 = arith.subi %c8_i32_5, %12 : i32
      %c0_i32_6 = arith.constant 0 : i32
      %c8_i32_7 = arith.constant 8 : i32
      %14 = arith.maxsi %c0_i32_6, %13 : i32
      %15 = arith.minsi %c8_i32_7, %14 : i32
      %c0 = arith.constant 0 : index
      %c0_8 = arith.constant 0 : index
      %16 = vector.load %arg4[%c0, %c0_8] : memref<8x128xf32, #tpu.memory_space<vmem>>, vector<8x128xf32>
      %c0_i32_9 = arith.constant 0 : i32
      %c8_i32_10 = arith.constant 8 : i32
      %17 = arith.muli %c0_i32_9, %c8_i32_10 : i32
      %18 = tpu.assume_multiple %17, 8 : i32
      %19 = arith.index_cast %18 : i32 to index
      %c0_11 = arith.constant 0 : index
      %c0_12 = arith.constant 0 : index
      %20 = vector.load %arg2[%19, %c0_11, %c0_12] : memref<8x8x128xf32, #tpu.memory_space<vmem>>, vector<8x8x128xf32>
      %21 = arith.index_cast %18 : i32 to index
      %c0_13 = arith.constant 0 : index
      %c0_14 = arith.constant 0 : index
      %22 = vector.load %arg3[%21, %c0_13, %c0_14] : memref<8x8x128xf32, #tpu.memory_space<vmem>>, vector<8x8x128xf32>
      %23 = arith.subf %20, %22 : vector<8x8x128xf32>
      %24 = tpu.iota {dimensions = array<i32: 0>} : vector<8x8x128xi32>
      %25 = vector.broadcast %18 : i32 to vector<8x8x128xi32>
      %26 = arith.addi %25, %24 : vector<8x8x128xi32>
      %27 = vector.broadcast %15 : i32 to vector<8x8x128xi32>
      %28 = arith.cmpi slt, %26, %27 : vector<8x8x128xi32>
      %29 = arith.mulf %23, %23 : vector<8x8x128xf32>
      %cst_15 = arith.constant 0.000000e+00 : f32
      %30 = vector.broadcast %cst_15 : f32 to vector<8x8x128xf32>
      %31 = arith.select %28, %29, %30 : vector<8x8x128xi1>, vector<8x8x128xf32>
      %cst_16 = arith.constant dense<0.000000e+00> : vector<8x128xf32>
      %32 = vector.multi_reduction <add>, %31, %cst_16 [0] : vector<8x8x128xf32> to vector<8x128xf32>
      %33 = arith.addf %5, %32 : vector<8x128xf32>
      %c1_i32_17 = arith.constant 1 : i32
      %34 = arith.addf %16, %33 : vector<8x128xf32>
      %c0_18 = arith.constant 0 : index
      %c0_19 = arith.constant 0 : index
      %35 = vector.load %arg4[%c0_18, %c0_19] : memref<8x128xf32, #tpu.memory_space<vmem>>, vector<8x128xf32>
      tpu.vector_store %arg4[%c0_18, %c0_19], %34 {strides = array<i32>} : memref<8x128xf32, #tpu.memory_space<vmem>>, vector<8x128xf32>,
    } else {
    }
    return
  }
  func.func @transform_0(%arg0: i32, %arg1: i32) -> (i32, i32, i32) {
    %c0_i32 = arith.constant 0 : i32
    %c0_i32_0 = arith.constant 0 : i32
    %c0_i32_1 = arith.constant 0 : i32
    return %arg1, %c0_i32, %c0_i32_0 : i32, i32, i32
  }
  func.func @transform_1(%arg0: i32, %arg1: i32) -> (i32, i32, i32) {
    %c0_i32 = arith.constant 0 : i32
    %c0_i32_0 = arith.constant 0 : i32
    %c0_i32_1 = arith.constant 0 : i32
    return %arg1, %c0_i32, %c0_i32_0 : i32, i32, i32
  }
  func.func @transform_2(%arg0: i32, %arg1: i32) -> (i32, i32) {
    %c0_i32 = arith.constant 0 : i32
    %c0_i32_0 = arith.constant 0 : i32
    return %arg0, %c0_i32 : i32, i32
  }
}

</mosaic_0001>

<llo_original>
// kernel: tpu_custom_call.1
$region0: #{tpu_custom_call.1}
  #allocation0 [shape = 'u32[]', space=smem, size = 0x4, offset = 0x4, fixed_abs, tag = 'smem constant byte address 0x4 - core index']
  #allocation1 [shape = 'u32[144,128]{1,0:T(1,128)}', space=vmem, size = 0x12000, scoped, tag = 'internal scratch']
  %s0 = inlined_call_operand.hbm [shape: f32[8,8,128], index: 0, kind: input, shape index: {}]
  %s1 = inlined_call_operand.hbm [shape: f32[8,8,128], index: 1, kind: input, shape index: {}]
  %s2 = inlined_call_operand.hbm [shape: f32[8,128], index: 2, kind: output, shape index: {}]
  %s3 = sld [smem:[#allocation0]]
  $region38: #{tpu_custom_call.1} parent=0
    _
  %s5 = ssub.s32 1, %s3
  %s6 = scalar_select 0, %s5, %s3
  $region1: #{tpu_custom_call.1} parent=0
    #allocation2 [shape = 'u8[32768]{0}', space=vmem, size = 0x8000, scoped, tag = 'input window, operand 0, single buffered']
    #allocation3 [shape = 's32[1]{0}', space=sflag, size = 0x4, scoped, tag = 'scoped memory for tpu_custom_call.1']
    #allocation4 [shape = 's32[1]{0}', space=sflag, size = 0x4, scoped, tag = 'scoped memory for tpu_custom_call.1']
    #allocation5 [shape = 'u8[32768]{0}', space=vmem, size = 0x8000, scoped, tag = 'input window, operand 1, single buffered']
    #allocation6 [shape = 's32[1]{0}', space=sflag, size = 0x4, scoped, tag = 'scoped memory for tpu_custom_call.1']
    #allocation7 [shape = 'u8[4096]{0}', space=vmem, size = 0x1000, scoped, tag = 'output window, operand 0, single buffered']
    %7 = vsyncpa [#allocation3], 0
    %8 = vsyncpa [#allocation6], 0
    %9 = vsyncpa [#allocation4], 0
    // Predicated region
    $region2: #{tpu_custom_call.1} parent=1 // pred_check
      _
    $region3: #{tpu_custom_call.1} parent=1 // pred_check_branch
      %11 = sbr.rel (0) target = $region5
    $region4: #{tpu_custom_call.1} parent=1 // pred_region
      %s13 = ssub.s32 1024, 1024
      %14 = vsyncadd [#allocation3], %s13
      %s15 = sshll.u32 [#allocation2], 4
      %s16 = int_to_ptr.vmem [resolvable:$true] %s15
      %21 = dma.hbm_to_vmem [thread:$0]  %s0, 1024, %s16, [#allocation3], 128, 128, 8
    $region5: #{tpu_custom_call.1} parent=1 // pred_fallthru
      _
    // Predicated region
    $region6: #{tpu_custom_call.1} parent=1 // pred_check
      _
    $region7: #{tpu_custom_call.1} parent=1 // pred_check_branch
      %23 = sbr.rel (0) target = $region9
    $region8: #{tpu_custom_call.1} parent=1 // pred_region
      %s25 = ssub.s32 1024, 1024
      %26 = vsyncadd [#allocation6], %s25
      %s27 = sshll.u32 [#allocation5], 4
      %s28 = int_to_ptr.vmem [resolvable:$true] %s27
      %33 = dma.hbm_to_vmem [thread:$0]  %s1, 1024, %s28, [#allocation6], 128, 128, 8
    $region9: #{tpu_custom_call.1} parent=1 // pred_fallthru
      _
    // Predicated region
    $region10: #{tpu_custom_call.1} parent=1 // pred_check
      _
    $region11: #{tpu_custom_call.1} parent=1 // pred_check_branch
      %35 = sbr.rel (0) target = $region13
    $region12: #{tpu_custom_call.1} parent=1 // pred_region
      %36 = dma.done [#allocation3], 1024
    $region13: #{tpu_custom_call.1} parent=1 // pred_fallthru
      _
    // Predicated region
    $region14: #{tpu_custom_call.1} parent=1 // pred_check
      _
    $region15: #{tpu_custom_call.1} parent=1 // pred_check_branch
      %38 = sbr.rel (0) target = $region17
    $region16: #{tpu_custom_call.1} parent=1 // pred_region
      %39 = dma.done [#allocation6], 1024
    $region17: #{tpu_custom_call.1} parent=1 // pred_fallthru
      _
    %p40 = scmp.eq.s32.totalorder 0, 0
    // Predicated region
    $region18: #{tpu_custom_call.1} parent=1 // pred_check
      %p41 = pneg %p40
    $region19: #{tpu_custom_call.1} parent=1 // pred_check_branch
      %43 = sbr.rel (%p41) target = $region21
    $region20: #{tpu_custom_call.1} parent=1 // pred_region
      %44 = vst [vmem:[#allocation7] sm:$0xff] 0.0
    $region21: #{tpu_custom_call.1} parent=1 // pred_fallthru
      _
    %s45 = sadd.s32 0, 0
    %p46 = scmp.lt.s32.totalorder %s45, 0
    // Predicated region
    $region22: #{tpu_custom_call.1} parent=1 // pred_check
      %p47 = pneg %p46
    $region23: #{tpu_custom_call.1} parent=1 // pred_check_branch
      %49 = sbr.rel (%p47) target = $region25
    $region24: #{tpu_custom_call.1} parent=1 // pred_region
      %v50 = vld [vmem:[#allocation7] sm:$0xff]
      %s51 = smul.u32 0, 8
      %s52 = scalar_lea.vmem [#allocation2], %s51
      %v53 = vld [vmem:[%s52] sm:$0xff]
      %v54 = vld [vmem:[%s52 + $0x8] sm:$0xff]
      %v55 = vld [vmem:[%s52 + $0x10] sm:$0xff]
      %v56 = vld [vmem:[%s52 + $0x18] sm:$0xff]
      %v57 = vld [vmem:[%s52 + $0x20] sm:$0xff]
      %v58 = vld [vmem:[%s52 + $0x28] sm:$0xff]
      %v59 = vld [vmem:[%s52 + $0x30] sm:$0xff]
      %v60 = vld [vmem:[%s52 + $0x38] sm:$0xff]
      %s61 = scalar_lea.vmem [#allocation5], %s51
      %v62 = vld [vmem:[%s61] sm:$0xff]
      %v63 = vld [vmem:[%s61 + $0x8] sm:$0xff]
      %v64 = vld [vmem:[%s61 + $0x10] sm:$0xff]
      %v65 = vld [vmem:[%s61 + $0x18] sm:$0xff]
      %v66 = vld [vmem:[%s61 + $0x20] sm:$0xff]
      %v67 = vld [vmem:[%s61 + $0x28] sm:$0xff]
      %v68 = vld [vmem:[%s61 + $0x30] sm:$0xff]
      %v69 = vld [vmem:[%s61 + $0x38] sm:$0xff]
      %v70 = vsub.f32 %v53, %v62
      %v71 = vsub.f32 %v54, %v63
      %v72 = vsub.f32 %v55, %v64
      %v73 = vsub.f32 %v56, %v65
      %v74 = vsub.f32 %v57, %v66
      %v75 = vsub.f32 %v58, %v67
      %v76 = vsub.f32 %v59, %v68
      %v77 = vsub.f32 %v60, %v69
      %v78 = vmul.f32 %v70, %v70
      %v79 = vmul.f32 %v71, %v71
      %v80 = vmul.f32 %v72, %v72
      %v81 = vmul.f32 %v73, %v73
      %v82 = vmul.f32 %v74, %v74
      %v83 = vmul.f32 %v75, %v75
      %v84 = vmul.f32 %v76, %v76
      %v85 = vmul.f32 %v77, %v77
      %v86 = vadd.f32 %v78, %v79
      %v87 = vadd.f32 %v86, %v80
      %v88 = vadd.f32 %v87, %v81
      %v89 = vadd.f32 %v88, %v82
      %v90 = vadd.f32 %v89, %v83
      %v91 = vadd.f32 %v90, %v84
      %v92 = vadd.f32 %v91, %v85
      %v93 = vadd.f32 %v92, 0.0
      %v94 = vadd.f32 %v50, %v93
      %95 = vst [vmem:[#allocation7] sm:$0xff] %v94
    $region25: #{tpu_custom_call.1} parent=1 // pred_fallthru
      _
    %p96 = scmp.ge.s32.totalorder %s45, 0
    // Predicated region
    $region26: #{tpu_custom_call.1} parent=1 // pred_check
      %p97 = pneg %p96
    $region27: #{tpu_custom_call.1} parent=1 // pred_check_branch
      %99 = sbr.rel (%p97) target = $region29
    $region28: #{tpu_custom_call.1} parent=1 // pred_region
      %s100 = smul.u32 %s45, 8
      %s101 = ssub.s32 8, %s100
      %p102 = scmp.gt.s32.totalorder %s101, 0
      %s103 = scalar_select %p102, %s101, 0
      %p104 = scmp.lt.s32.totalorder %s103, 8
      %s105 = scalar_select %p104, %s103, 8
      %v106 = vld [vmem:[#allocation7] sm:$0xff]
      %s107 = smul.u32 0, 8
      %s108 = scalar_lea.vmem [#allocation2], %s107
      %v109 = vld [vmem:[%s108] sm:$0xff]
      %v110 = vld [vmem:[%s108 + $0x8] sm:$0xff]
      %v111 = vld [vmem:[%s108 + $0x10] sm:$0xff]
      %v112 = vld [vmem:[%s108 + $0x18] sm:$0xff]
      %v113 = vld [vmem:[%s108 + $0x20] sm:$0xff]
      %v114 = vld [vmem:[%s108 + $0x28] sm:$0xff]
      %v115 = vld [vmem:[%s108 + $0x30] sm:$0xff]
      %v116 = vld [vmem:[%s108 + $0x38] sm:$0xff]
      %s117 = scalar_lea.vmem [#allocation5], %s107
      %v118 = vld [vmem:[%s117] sm:$0xff]
      %v119 = vld [vmem:[%s117 + $0x8] sm:$0xff]
      %v120 = vld [vmem:[%s117 + $0x10] sm:$0xff]
      %v121 = vld [vmem:[%s117 + $0x18] sm:$0xff]
      %v122 = vld [vmem:[%s117 + $0x20] sm:$0xff]
      %v123 = vld [vmem:[%s117 + $0x28] sm:$0xff]
      %v124 = vld [vmem:[%s117 + $0x30] sm:$0xff]
      %v125 = vld [vmem:[%s117 + $0x38] sm:$0xff]
      %v126 = vsub.f32 %v109, %v118
      %v127 = vsub.f32 %v110, %v119
      %v128 = vsub.f32 %v111, %v120
      %v129 = vsub.f32 %v112, %v121
      %v130 = vsub.f32 %v113, %v122
      %v131 = vsub.f32 %v114, %v123
      %v132 = vsub.f32 %v115, %v124
      %v133 = vsub.f32 %v116, %v125
      %v134 = vstv 0
      %v135 = vadd.s32 %v134, 1
      %v136 = vadd.s32 %v134, 2
      %v137 = vadd.s32 %v134, 3
      %v138 = vadd.s32 %v134, 4
      %v139 = vadd.s32 %v134, 5
      %v140 = vadd.s32 %v134, 6
      %v141 = vadd.s32 %v134, 7
      %v142 = vstv %s105
      %vm143 = vcmp.lt.s32.totalorder %v134, %v142
      %vm144 = vcmp.lt.s32.totalorder %v135, %v142
      %vm145 = vcmp.lt.s32.totalorder %v136, %v142
      %vm146 = vcmp.lt.s32.totalorder %v137, %v142
      %vm147 = vcmp.lt.s32.totalorder %v138, %v142
      %vm148 = vcmp.lt.s32.totalorder %v139, %v142
      %vm149 = vcmp.lt.s32.totalorder %v140, %v142
      %vm150 = vcmp.lt.s32.totalorder %v141, %v142
      %v151 = vmul.f32 %v126, %v126
      %v152 = vmul.f32 %v127, %v127
      %v153 = vmul.f32 %v128, %v128
      %v154 = vmul.f32 %v129, %v129
      %v155 = vmul.f32 %v130, %v130
      %v156 = vmul.f32 %v131, %v131
      %v157 = vmul.f32 %v132, %v132
      %v158 = vmul.f32 %v133, %v133
      %v159 = vsel %vm143, %v151, 0.0
      %v160 = vsel %vm144, %v152, 0.0
      %v161 = vsel %vm145, %v153, 0.0
      %v162 = vsel %vm146, %v154, 0.0
      %v163 = vsel %vm147, %v155, 0.0
      %v164 = vsel %vm148, %v156, 0.0
      %v165 = vsel %vm149, %v157, 0.0
      %v166 = vsel %vm150, %v158, 0.0
      %v167 = vadd.f32 %v159, %v160
      %v168 = vadd.f32 %v167, %v161
      %v169 = vadd.f32 %v168, %v162
      %v170 = vadd.f32 %v169, %v163
      %v171 = vadd.f32 %v170, %v164
      %v172 = vadd.f32 %v171, %v165
      %v173 = vadd.f32 %v172, %v166
      %v174 = vadd.f32 %v173, 0.0
      %v175 = vadd.f32 %v106, %v174
      %176 = vst [vmem:[#allocation7] sm:$0xff] %v175
    $region29: #{tpu_custom_call.1} parent=1 // pred_fallthru
      _
    // Predicated region
    $region30: #{tpu_custom_call.1} parent=1 // pred_check
      _
    $region31: #{tpu_custom_call.1} parent=1 // pred_check_branch
      %178 = sbr.rel (0) target = $region33
    $region32: #{tpu_custom_call.1} parent=1 // pred_region
      %s180 = ssub.s32 128, 128
      %181 = vsyncadd [#allocation4], %s180
      %s183 = sshll.u32 [#allocation7], 4
      %s184 = int_to_ptr.vmem [resolvable:$true] %s183
      %186 = dma.vmem_to_hbm [thread:$0]  %s184, 128, %s2, [#allocation4]
    $region33: #{tpu_custom_call.1} parent=1 // pred_fallthru
      _
    // Predicated region
    $region34: #{tpu_custom_call.1} parent=1 // pred_check
      _
    $region35: #{tpu_custom_call.1} parent=1 // pred_check_branch
      %188 = sbr.rel (0) target = $region37
    $region36: #{tpu_custom_call.1} parent=1 // pred_region
      %189 = dma.done [#allocation4], 128
    $region37: #{tpu_custom_call.1} parent=1 // pred_fallthru
      _
    %190 = vsyncpa [#allocation3], 1
    %191 = vsyncpa [#allocation6], 1
    %192 = vsyncpa [#allocation4], 1

</llo_original>
